<compile_context>
chip_gen: v5e
topology: v5e:2x2
jax: 0.10.0
libtpu: 0.0.40
codegen_flags: <defaults>
</compile_context>

<pallas_src>
import functools

import jax
import jax.numpy as jnp
from jax.experimental import pallas as pl
from jax.experimental.pallas import tpu as pltpu


def _layernorm_kernel(x_ref, alpha_ref, bias_ref, o_ref, *, eps):
    # x_ref / o_ref: (tS, D) tile.  alpha_ref / bias_ref: (1, D), resident.
    x = x_ref[...].astype(jnp.float32)
    d = x.shape[-1]

    # Single-pass statistics: sum and sum(x*x) in one sweep over the tile.
    s = jnp.sum(x, axis=-1, keepdims=True)
    sq = jnp.sum(x * x, axis=-1, keepdims=True)
    mean = s * (1.0 / d)
    # torch.Tensor.std uses Bessel's correction (divide by D - 1).
    # Note: for D == 1 this yields NaN, matching torch.std(ddof=1).
    var = (sq - s * mean) / (d - 1)
    var = jnp.maximum(var, 0.0)  # guard tiny negatives from cancellation
    std = jnp.sqrt(var)

    # Narrow (tS, 1) reciprocal, reused across the row; exact (approx=False)
    # to keep bit-level parity with the PyTorch module.
    inv = pl.reciprocal(std + eps, approx=False)

    alpha = alpha_ref[...].astype(jnp.float32)   # (1, D) broadcasts over rows
    bias = bias_ref[...].astype(jnp.float32)
    y = (x - mean) * inv * alpha + bias
    o_ref[...] = y.astype(o_ref.dtype)


def _choose_block_rows(n_rows, d, dtype, target_bytes=4 * 1024 * 1024):
    """Pick a sublane-aligned row tile (<= ~4 MiB) for the flattened (N, D) array.

    Never returns a whole-axis block for large N (which could exceed v7x's
    64 MiB VMEM); prefers an exact divisor of N, otherwise callers use
    pl.cdiv + Pallas boundary padding for the tail block.
    """
    itemsize = jnp.dtype(dtype).itemsize
    pack = max(8, 32 // itemsize)          # sublane packing: 8 f32, 16 bf16, 32 int8
    if n_rows <= pack:
        return n_rows                      # one block == full axis (always legal)

    max_rows = max(pack, (target_bytes // (d * itemsize)) // pack * pack)
    n_aligned = (n_rows // pack) * pack    # >= pack since n_rows > pack
    t = min(max_rows, n_aligned)

    # v7x has 2 TensorCores: avoid a single-block grid when rows permit so both
    # cores get work (harmless on single-TC v5e/v6e).
    if t >= n_rows and n_rows >= 2 * pack:
        t = ((n_rows // 2 + pack - 1) // pack) * pack

    # Prefer an exact divisor reasonably close to t (no masked tail block);
    # otherwise keep the pack-aligned t and rely on pl.cdiv + boundary padding.
    for cand in range(t, pack - 1, -pack):
        if n_rows % cand == 0:
            if cand * 2 >= t:
                return cand
            break
    return t


def layer_norm_forward(x, alpha, bias, eps=1e-6):
    """x: (..., D); alpha/bias: (D,).  Matches PyTorch LayerNormalization.forward."""
    orig_shape = x.shape
    D = orig_shape[-1]
    x2 = x.reshape(-1, D)                  # flatten (B, S, D) -> (B*S, D)
    N = x2.shape[0]

    alpha2 = jnp.asarray(alpha).reshape(1, D).astype(x.dtype)
    bias2 = jnp.asarray(bias).reshape(1, D).astype(x.dtype)

    tS = _choose_block_rows(N, D, x.dtype)
    grid = (pl.cdiv(N, tS),)

    out = pl.pallas_call(
        functools.partial(_layernorm_kernel, eps=float(eps)),
        out_shape=jax.ShapeDtypeStruct((N, D), x.dtype),
        grid=grid,
        in_specs=[
            pl.BlockSpec((tS, D), lambda i: (i, 0)),
            pl.BlockSpec((1, D), lambda i: (0, 0)),
            pl.BlockSpec((1, D), lambda i: (0, 0)),
        ],
        out_specs=pl.BlockSpec((tS, D), lambda i: (i, 0)),
        input_output_aliases={0: 0},
        compiler_params=pltpu.CompilerParams(
            dimension_semantics=("parallel",),
            vmem_limit_bytes=32 * 1024 * 1024,
        ),
    )(x2, alpha2, bias2)
    return out.reshape(orig_shape)


def decoder_forward(x, encoder_output, cross_mask, tgt_mask, layers, alpha, bias,
                    eps=1e-6):
    """Mirror of Decoder.forward: apply each layer, then the Pallas LayerNorm."""
    # TODO(synk): DecoderBlock internals (self/cross attention, FFN) are not part
    # of the provided spec; layers are applied as opaque JAX callables here.
    for layer in layers:
        x = layer(x, encoder_output, cross_mask, tgt_mask)
    return layer_norm_forward(x, alpha, bias, eps)


if __name__ == "__main__":
    # D=128 keeps the output lane-dense (multiple of 128 lanes); still small.
    B, S, D = 2, 8, 128
    eps = 1e-6

    key = jax.random.PRNGKey(0)
    kx, ke, ka, kb = jax.random.split(key, 4)
    x = jax.random.normal(kx, (B, S, D), dtype=jnp.float32)
    encoder_output = jax.random.normal(ke, (B, S, D), dtype=jnp.float32)
    alpha = 1.0 + 0.1 * jax.random.normal(ka, (D,), dtype=jnp.float32)
    bias = 0.1 * jax.random.normal(kb, (D,), dtype=jnp.float32)

    # Masks are part of the Decoder signature; the stand-in layers below accept
    # them (the real DecoderBlock math is not in the spec).
    tgt_mask = jnp.tril(jnp.ones((1, 1, S, S), dtype=jnp.float32))
    cross_mask = jnp.ones((1, 1, S, S), dtype=jnp.float32)

    def make_demo_layer(scale):
        def layer(h, enc_out, c_mask, t_mask):
            return h + scale * enc_out
        return layer

    layers = [make_demo_layer(0.5), make_demo_layer(0.25)]

    out = decoder_forward(x, encoder_output, cross_mask, tgt_mask, layers,
                          alpha, bias, eps)
    out = jax.block_until_ready(out)

    # Pure-JAX reference with identical semantics (unbiased std, eps on std).
    h = x
    for layer in layers:
        h = layer(h, encoder_output, cross_mask, tgt_mask)
    mean = jnp.mean(h, axis=-1, keepdims=True)
    std = jnp.std(h, axis=-1, keepdims=True, ddof=1)
    ref = (h - mean) / (std + eps) * alpha + bias

    assert out.shape == (B, S, D)
    assert jnp.allclose(out, ref, atol=1e-5, rtol=1e-5), "mismatch vs reference"
    print("KERNEL_OK")
</pallas_src>

<mosaic_0001>
module attributes {stable_mosaic.version = 11 : i64} {
  func.func @_layernorm_kernel(%arg0: i32, %arg1: memref<8x128xf32, #tpu.memory_space<vmem>>, %arg2: memref<1x128xf32, #tpu.memory_space<vmem>>, %arg3: memref<1x128xf32, #tpu.memory_space<vmem>>, %arg4: memref<8x128xf32, #tpu.memory_space<vmem>>) attributes {dimension_semantics = [#tpu.dimension_semantics<parallel>], iteration_bounds = array<i64: 2>, scalar_prefetch = 0 : i64, scratch_operands = 0 : i64, tpu.core_type = #tpu.core_type<tc>, window_params = [{transform_indices = @transform_0, window_bounds = array<i64: 8, 128>}, {pipeline_mode = #tpu.pipeline_mode<synchronous>, transform_indices = @transform_1, window_bounds = array<i64: 1, 128>}, {pipeline_mode = #tpu.pipeline_mode<synchronous>, transform_indices = @transform_2, window_bounds = array<i64: 1, 128>}, {transform_indices = @transform_3, window_bounds = array<i64: 8, 128>}]} {
    %c0 = arith.constant 0 : index
    %c0_0 = arith.constant 0 : index
    %0 = vector.load %arg1[%c0, %c0_0] : memref<8x128xf32, #tpu.memory_space<vmem>>, vector<8x128xf32>
    %cst = arith.constant dense<0.000000e+00> : vector<8xf32>
    %1 = vector.multi_reduction <add>, %0, %cst [1] : vector<8x128xf32> to vector<8xf32>
    %2 = vector.shape_cast %1 : vector<8xf32> to vector<8x1xf32>
    %3 = arith.mulf %0, %0 : vector<8x128xf32>
    %cst_1 = arith.constant dense<0.000000e+00> : vector<8xf32>
    %4 = vector.multi_reduction <add>, %3, %cst_1 [1] : vector<8x128xf32> to vector<8xf32>
    %5 = vector.shape_cast %4 : vector<8xf32> to vector<8x1xf32>
    %cst_2 = arith.constant 7.812500e-03 : f32
    %6 = vector.broadcast %cst_2 : f32 to vector<8x1xf32>
    %7 = arith.mulf %2, %6 : vector<8x1xf32>
    %8 = arith.mulf %2, %7 : vector<8x1xf32>
    %9 = arith.subf %5, %8 : vector<8x1xf32>
    %cst_3 = arith.constant 1.270000e+02 : f32
    %10 = vector.broadcast %cst_3 : f32 to vector<8x1xf32>
    %11 = arith.divf %9, %10 : vector<8x1xf32>
    %cst_4 = arith.constant 0.000000e+00 : f32
    %12 = vector.broadcast %cst_4 : f32 to vector<8x1xf32>
    %13 = arith.maximumf %11, %12 : vector<8x1xf32>
    %14 = math.sqrt %13 : vector<8x1xf32>
    %cst_5 = arith.constant 9.99999997E-7 : f32
    %15 = vector.broadcast %cst_5 : f32 to vector<8x1xf32>
    %16 = arith.addf %14, %15 : vector<8x1xf32>
    %17 = tpu.reciprocal %16 : vector<8x1xf32> -> vector<8x1xf32>
    %c0_6 = arith.constant 0 : index
    %c0_7 = arith.constant 0 : index
    %18 = vector.load %arg2[%c0_6, %c0_7] : memref<1x128xf32, #tpu.memory_space<vmem>>, vector<1x128xf32>
    %c0_8 = arith.constant 0 : index
    %c0_9 = arith.constant 0 : index
    %19 = vector.load %arg3[%c0_8, %c0_9] : memref<1x128xf32, #tpu.memory_space<vmem>>, vector<1x128xf32>
    %20 = vector.broadcast %7 : vector<8x1xf32> to vector<8x128xf32>
    %21 = arith.subf %0, %20 : vector<8x128xf32>
    %22 = vector.broadcast %17 : vector<8x1xf32> to vector<8x128xf32>
    %23 = arith.mulf %21, %22 : vector<8x128xf32>
    %24 = vector.broadcast %18 : vector<1x128xf32> to vector<8x128xf32>
    %25 = arith.mulf %23, %24 : vector<8x128xf32>
    %26 = vector.broadcast %19 : vector<1x128xf32> to vector<8x128xf32>
    %27 = arith.addf %25, %26 : vector<8x128xf32>
    %c0_10 = arith.constant 0 : index
    %c0_11 = arith.constant 0 : index
    %28 = vector.load %arg4[%c0_10, %c0_11] : memref<8x128xf32, #tpu.memory_space<vmem>>, vector<8x128xf32>
    tpu.vector_store %arg4[%c0_10, %c0_11], %27 {strides = array<i32>} : memref<8x128xf32, #tpu.memory_space<vmem>>, vector<8x128xf32>,
    return
  }
  func.func @transform_0(%arg0: i32) -> (i32, i32) {
    %c0_i32 = arith.constant 0 : i32
    %c0_i32_0 = arith.constant 0 : i32
    return %arg0, %c0_i32 : i32, i32
  }
  func.func @transform_1(%arg0: i32) -> (i32, i32) {
    %c0_i32 = arith.constant 0 : i32
    %c0_i32_0 = arith.constant 0 : i32
    %c0_i32_1 = arith.constant 0 : i32
    return %c0_i32, %c0_i32_0 : i32, i32
  }
  func.func @transform_2(%arg0: i32) -> (i32, i32) {
    %c0_i32 = arith.constant 0 : i32
    %c0_i32_0 = arith.constant 0 : i32
    %c0_i32_1 = arith.constant 0 : i32
    return %c0_i32, %c0_i32_0 : i32, i32
  }
  func.func @transform_3(%arg0: i32) -> (i32, i32) {
    %c0_i32 = arith.constant 0 : i32
    %c0_i32_0 = arith.constant 0 : i32
    return %arg0, %c0_i32 : i32, i32
  }
}

</mosaic_0001>

<llo_original>
// kernel: tpu_custom_call.1
$region0: #{tpu_custom_call.1}
  #allocation0 [shape = 'u32[]', space=smem, size = 0x4, offset = 0x4, fixed_abs, tag = 'smem constant byte address 0x4 - core index']
  #allocation1 [shape = 'u32[72,128]{1,0:T(1,128)}', space=vmem, size = 0x9000, scoped, tag = 'internal scratch']
  %s0 = inlined_call_operand.hbm [shape: f32[16,128], index: 0, kind: input, shape index: {}, may-alias: {0,3}]
  %s1 = inlined_call_operand.vmem [shape: f32[1,128], index: 1, kind: input, shape index: {}]
  %s2 = inlined_call_operand.vmem [shape: f32[1,128], index: 2, kind: input, shape index: {}]
  %s3 = inlined_call_operand.hbm [shape: f32[16,128], index: 3, kind: output, shape index: {}, may-alias: {0,3}]
  %s4 = sld [smem:[#allocation0]]
  $region49: #{tpu_custom_call.1} parent=0
    _
  %s6 = ssub.s32 1, %s4
  %s7 = scalar_select 0, %s6, %s4
  $region1: #{tpu_custom_call.1} parent=0
    #allocation2 [shape = 'u8[8192]{0}', space=vmem, size = 0x2000, scoped, tag = 'input window, operand 0']
    #allocation3 [shape = 's32[2]{0}', space=sflag, size = 0x8, scoped, tag = 'scoped memory for tpu_custom_call.1']
    #allocation4 [shape = 's32[2]{0}', space=sflag, size = 0x8, scoped, tag = 'scoped memory for tpu_custom_call.1']
    #allocation5 [shape = 'u8[8192]{0}', space=vmem, size = 0x2000, scoped, tag = 'output window, operand 0']
    %8 = vsyncpa [#allocation3], 0
    %s9 = scalar_lea.sflag [#allocation3], 1
    %10 = vsyncpa %s9, 0
    %11 = vsyncpa [#allocation4], 0
    %s12 = scalar_lea.sflag [#allocation4], 1
    %13 = vsyncpa %s12, 0
    loop: start=0, step=1, limit=4
    $region2: #{tpu_custom_call.1} parent=1 // loop_pre_header
      _
    $region3: #{tpu_custom_call.1} parent=1 // loop_header
      %s15 = sphi 0, %s19
      %p16 = scmp.ge.s32.totalorder %s15, 4
      %s25 = sphi 0, %s27
      %s28 = sphi 0, %s25
      %s29 = sphi 0, %s28
      %s45 = sphi 0, %s29
      %s49 = sphi 0, %s49
      %s51 = sphi 0, %s49
      %s52 = sphi 0, %s51
      %s66 = sphi 0, %s52
      %s70 = sphi 0, %s70
      %s72 = sphi 0, %s70
      %s73 = sphi 0, %s72
      %s87 = sphi 0, %s73
      %s93 = sphi 0, %s95
      %s96 = sphi 0, %s93
      %s97 = sphi 0, %s96
      %s113 = sphi 0, %s97
    $region4: #{tpu_custom_call.1} parent=1 // loop_header_branch
      %18 = sbr.rel (%p16) target = $region8
    $region5: #{tpu_custom_call.1} parent=1 // loop_body
      %s20 = ssub.s32 %s15, 1
      %s21 = ssub.s32 %s15, 2
      %s22 = sadd.s32 %s15, 1
      %s23 = ssub.s32 %s15, %s22
      %p24 = scmp.eq.s32.totalorder %s23, 0
      %s26 = sadd.s32 %s25, 1
      %s27 = scalar_select %p24, %s25, %s26
      %p30 = pneg %p24
      %p31 = scmp.eq.s32.totalorder %s15, 1
      %p32 = por %p30, %p31
      %p33 = scmp.ne.s32.totalorder %s25, %s28
      %p34 = scmp.eq.s32.totalorder %s15, 0
      %p35 = por %p33, %p34
      %p36 = scmp.ne.s32.totalorder %s25, %s28
      %p37 = scmp.eq.s32.totalorder %s20, 1
      %p38 = por %p36, %p37
      %p39 = scmp.ne.s32.totalorder %s28, %s29
      %p40 = scmp.eq.s32.totalorder %s20, 0
      %p41 = por %p39, %p40
      %p42 = scmp.ne.s32.totalorder %s28, %s29
      %p43 = scmp.eq.s32.totalorder %s21, 1
      %p44 = por %p42, %p43
      %p46 = scmp.ne.s32.totalorder %s29, %s45
      %p47 = scmp.eq.s32.totalorder %s21, 0
      %p48 = por %p46, %p47
      %s50 = sadd.s32 %s49, 1
      %p53 = scmp.eq.s32.totalorder %s15, 1
      %p54 = scmp.ne.s32.totalorder %s49, %s51
      %p55 = scmp.eq.s32.totalorder %s15, 0
      %p56 = por %p54, %p55
      %p57 = scmp.ne.s32.totalorder %s49, %s51
      %p58 = scmp.eq.s32.totalorder %s20, 1
      %p59 = por %p57, %p58
      %p60 = scmp.ne.s32.totalorder %s51, %s52
      %p61 = scmp.eq.s32.totalorder %s20, 0
      %p62 = por %p60, %p61
      %p63 = scmp.ne.s32.totalorder %s51, %s52
      %p64 = scmp.eq.s32.totalorder %s21, 1
      %p65 = por %p63, %p64
      %p67 = scmp.ne.s32.totalorder %s52, %s66
      %p68 = scmp.eq.s32.totalorder %s21, 0
      %p69 = por %p67, %p68
      %s71 = sadd.s32 %s70, 1
      %p74 = scmp.eq.s32.totalorder %s15, 1
      %p75 = scmp.ne.s32.totalorder %s70, %s72
      %p76 = scmp.eq.s32.totalorder %s15, 0
      %p77 = por %p75, %p76
      %p78 = scmp.ne.s32.totalorder %s70, %s72
      %p79 = scmp.eq.s32.totalorder %s20, 1
      %p80 = por %p78, %p79
      %p81 = scmp.ne.s32.totalorder %s72, %s73
      %p82 = scmp.eq.s32.totalorder %s20, 0
      %p83 = por %p81, %p82
      %p84 = scmp.ne.s32.totalorder %s72, %s73
      %p85 = scmp.eq.s32.totalorder %s21, 1
      %p86 = por %p84, %p85
      %p88 = scmp.ne.s32.totalorder %s73, %s87
      %p89 = scmp.eq.s32.totalorder %s21, 0
      %p90 = por %p88, %p89
      %s91 = ssub.s32 %s15, %s22
      %p92 = scmp.eq.s32.totalorder %s91, 0
      %s94 = sadd.s32 %s93, 1
      %s95 = scalar_select %p92, %s93, %s94
      %p98 = pneg %p92
      %p99 = scmp.eq.s32.totalorder %s15, 1
      %p100 = por %p98, %p99
      %p101 = scmp.ne.s32.totalorder %s93, %s96
      %p102 = scmp.eq.s32.totalorder %s15, 0
      %p103 = por %p101, %p102
      %p104 = scmp.ne.s32.totalorder %s93, %s96
      %p105 = scmp.eq.s32.totalorder %s20, 1
      %p106 = por %p104, %p105
      %p107 = scmp.ne.s32.totalorder %s96, %s97
      %p108 = scmp.eq.s32.totalorder %s20, 0
      %p109 = por %p107, %p108
      %p110 = scmp.ne.s32.totalorder %s96, %s97
      %p111 = scmp.eq.s32.totalorder %s21, 1
      %p112 = por %p110, %p111
      %p114 = scmp.ne.s32.totalorder %s97, %s113
      %p115 = scmp.eq.s32.totalorder %s21, 0
      %p116 = por %p114, %p115
      %p117 = scmp.le.s32.totalorder 1, %s15
      %p118 = scmp.lt.s32.totalorder %s15, 3
      %p119 = pnand %p117, %p118
      %p120 = pneg %p119
      // Predicated region
      $region9: #{tpu_custom_call.1} parent=5 // pred_check
        _
      $region10: #{tpu_custom_call.1} parent=5 // pred_check_branch
        %122 = sbr.rel (%p119) target = $region12
      $region11: #{tpu_custom_call.1} parent=5 // pred_region
        %s123 = ssub.s32 %s15, 1
        // Predicated region
        $region13: #{tpu_custom_call.1} parent=11 // pred_check
          %p124 = pneg %p62
        $region14: #{tpu_custom_call.1} parent=11 // pred_check_branch
          %126 = sbr.rel (%p124) target = $region16
        $region15: #{tpu_custom_call.1} parent=11 // pred_region
          _
        $region16: #{tpu_custom_call.1} parent=11 // pred_fallthru
          _
        // Predicated region
        $region17: #{tpu_custom_call.1} parent=11 // pred_check
          %p127 = pneg %p83
        $region18: #{tpu_custom_call.1} parent=11 // pred_check_branch
          %129 = sbr.rel (%p127) target = $region20
        $region19: #{tpu_custom_call.1} parent=11 // pred_region
          _
        $region20: #{tpu_custom_call.1} parent=11 // pred_fallthru
          _
      $region12: #{tpu_custom_call.1} parent=5 // pred_fallthru
        _
      %p130 = scmp.lt.s32.totalorder %s15, 2
      // Predicated region
      $region21: #{tpu_custom_call.1} parent=5 // pred_check
        %p131 = pneg %p130
      $region22: #{tpu_custom_call.1} parent=5 // pred_check_branch
        %133 = sbr.rel (%p131) target = $region24
      $region23: #{tpu_custom_call.1} parent=5 // pred_region
        // Predicated region
        $region25: #{tpu_custom_call.1} parent=23 // pred_check
          %p134 = pneg %p35
        $region26: #{tpu_custom_call.1} parent=23 // pred_check_branch
          %136 = sbr.rel (%p134) target = $region28
        $region27: #{tpu_custom_call.1} parent=23 // pred_region
          %s137 = sand.u32 %s25, 1
          %s138 = scalar_lea.sflag [#allocation3], %s137
          %s139 = sand.u32 %s25, 1
          %s140 = smul.addr %s139, 8
          %s141 = scalar_lea.vmem [#allocation2], %s140
          %143 = vsyncadd %s138, 0
          %s144 = smul.addr %s15, 8
          %s145 = scalar_lea.hbm %s0, %s144
          %s147 = sshll.u32 %s145, 4
          %s148 = int_to_ptr.hbm [resolvable:$true] %s147
          %s149 = sshll.u32 %s141, 4
          %s150 = int_to_ptr.vmem [resolvable:$true] %s149
          %152 = dma.hbm_to_vmem [thread:$0]  %s148, 128, %s150, %s138
        $region28: #{tpu_custom_call.1} parent=23 // pred_fallthru
          _
      $region24: #{tpu_custom_call.1} parent=5 // pred_fallthru
        _
      %p153 = scmp.le.s32.totalorder 1, %s15
      %p154 = scmp.lt.s32.totalorder %s15, 3
      %p155 = pnand %p153, %p154
      %p156 = pneg %p155
      // Predicated region
      $region29: #{tpu_custom_call.1} parent=5 // pred_check
        _
      $region30: #{tpu_custom_call.1} parent=5 // pred_check_branch
        %158 = sbr.rel (%p155) target = $region32
      $region31: #{tpu_custom_call.1} parent=5 // pred_region
        %s159 = ssub.s32 %s15, 1
        %s160 = sand.u32 %s28, 1
        %s161 = scalar_lea.sflag [#allocation3], %s160
        %s162 = sand.u32 %s28, 1
        %s163 = smul.addr %s162, 8
        %s164 = scalar_lea.vmem [#allocation2], %s163
        // Predicated region
        $region33: #{tpu_custom_call.1} parent=31 // pred_check
          %p165 = pneg %p41
        $region34: #{tpu_custom_call.1} parent=31 // pred_check_branch
          %167 = sbr.rel (%p165) target = $region36
        $region35: #{tpu_custom_call.1} parent=31 // pred_region
          %169 = dma.done %s161, 128
        $region36: #{tpu_custom_call.1} parent=31 // pred_fallthru
          _
        %s170 = sand.u32 %s28, 1
        %s171 = scalar_lea.sflag [#allocation3], %s170
        %s172 = sand.u32 %s28, 1
        %s173 = smul.addr %s172, 8
        %s174 = scalar_lea.vmem [#allocation2], %s173
        %p175 = pneg %p41
        %p176 = pneg %p38
        %p177 = pneg %p62
        %p178 = pneg %p59
        %p179 = pneg %p83
        %p180 = pneg %p80
        %p181 = pneg %p109
        %p182 = pneg %p106
        %s183 = sand.u32 %s96, 1
        %s184 = scalar_lea.sflag [#allocation4], %s183
        %s185 = sand.u32 %s96, 1
        %s186 = smul.addr %s185, 8
        %s187 = scalar_lea.vmem [#allocation5], %s186
        %v188 = vld [vmem:[%s164] sm:$0xff]
        %189 = vadd.xlane.f32.xlu0 %v188
        %v190 = vpop.xlane.xlu0 %189
        %v191 = vmul.f32 %v188, %v188
        %192 = vadd.xlane.f32.xlu0 %v191
        %v193 = vpop.xlane.xlu0 %192
        %v194 = vmul.f32 %v190, 0.0078125
        %v195 = vmul.f32 %v190, %v194
        %v196 = vsub.f32 %v193, %v195
        %v197 = vrcp.pop 127.0
        %v198 = vmul.f32 127.0, %v197
        %v199 = vsub.f32 1.0, %v198
        %v200 = vmul.f32 %v197, %v199
        %v201 = vadd.f32 %v197, %v200
        %vm202 = vweird.f32 %v197
        %v203 = vsel %vm202, %v197, %v201
        %v204 = vmul.f32 %v196, %v203
        %v205 = vmax.f32 %v204, 0.0
        %v206 = vrsqrt.pop %v205
        %v207 = vmul.f32 %v206, %v205
        %v208 = vmul.f32 %v207, %v206
        %v209 = vmul.f32 0.5, %v208
        %v210 = vsub.f32 1.5, %v209
        %v211 = vmul.f32 %v206, %v210
        %v212 = vmul.f32 %v205, %v211
        %vm213 = vcmp.eq.f32.partialorder %v205, inf
        %v214 = vsel %vm213, %v205, %v212
        %vm215 = vcmp.eq.f32.partialorder %v205, 0.0
        %v216 = vand.u32 %v205, 2147483648
        %v217 = vsel %vm215, %v216, %v214
        %v218 = vadd.f32 %v217, 1e-06
        %v219 = vrcp.pop %v218
        %v220 = vmul.f32 %v218, %v219
        %v221 = vsub.f32 1.0, %v220
        %v222 = vmul.f32 %v219, %v221
        %v223 = vadd.f32 %v219, %v222
        %vm224 = vweird.f32 %v218
        %vm225 = vweird.f32 %v219
        %vm226 = vmor %vm224, %vm225
        %v227 = vsel %vm226, %v219, %v223
        %v228 = vand.u32 2147483647, %v218
        %vm229 = vcmp.eq.f32.partialorder %v228, 8.507059e+37
        %v230 = vand.u32 %v218, 2147483648
        %v231 = vor.u32 1.1754944e-38, %v230
        %v232 = vsel %vm229, %v231, %v227
        %v233 = vld [vmem:[%s1] sm:$0x1]
        %v234 = vld [vmem:[%s2] sm:$0x1]
        %v235 = vsub.f32 %v188, %v194
        %v236 = vmul.f32 %v235, %v232
        %v238 = vperm.slane %v233, 0
        %v240 = vmul.f32 %v236, %v238
        %v242 = vperm.slane %v234, 0
        %v244 = vadd.f32 %v240, %v242
        %245 = vst [vmem:[%s187] sm:$0xff] %v244
        %s246 = sand.u32 %s96, 1
        %s247 = scalar_lea.sflag [#allocation4], %s246
        %s248 = sand.u32 %s96, 1
        %s249 = smul.addr %s248, 8
        %s250 = scalar_lea.vmem [#allocation5], %s249
        // Predicated region
        $region37: #{tpu_custom_call.1} parent=31 // pred_check
          %p251 = pneg %p106
        $region38: #{tpu_custom_call.1} parent=31 // pred_check_branch
          %253 = sbr.rel (%p251) target = $region40
        $region39: #{tpu_custom_call.1} parent=31 // pred_region
          %255 = vsyncadd %s247, 0
          %s256 = smul.addr %s20, 8
          %s257 = scalar_lea.hbm %s3, %s256
          %s259 = sshll.u32 %s250, 4
          %s260 = int_to_ptr.vmem [resolvable:$true] %s259
          %s261 = sshll.u32 %s257, 4
          %s262 = int_to_ptr.hbm [resolvable:$true] %s261
          %264 = dma.vmem_to_hbm [thread:$0]  %s260, 128, %s262, %s247
        $region40: #{tpu_custom_call.1} parent=31 // pred_fallthru
          _
      $region32: #{tpu_custom_call.1} parent=5 // pred_fallthru
        _
      %p265 = scmp.le.s32.totalorder 2, %s15
      // Predicated region
      $region41: #{tpu_custom_call.1} parent=5 // pred_check
        %p266 = pneg %p265
      $region42: #{tpu_custom_call.1} parent=5 // pred_check_branch
        %268 = sbr.rel (%p266) target = $region44
      $region43: #{tpu_custom_call.1} parent=5 // pred_region
        %s269 = ssub.s32 %s15, 2
        // Predicated region
        $region45: #{tpu_custom_call.1} parent=43 // pred_check
          %p270 = pneg %p112
        $region46: #{tpu_custom_call.1} parent=43 // pred_check_branch
          %272 = sbr.rel (%p270) target = $region48
        $region47: #{tpu_custom_call.1} parent=43 // pred_region
          %s273 = sand.u32 %s97, 1
          %s274 = scalar_lea.sflag [#allocation4], %s273
          %s275 = sand.u32 %s97, 1
          %s276 = smul.addr %s275, 8
          %s277 = scalar_lea.vmem [#allocation5], %s276
          %279 = dma.done %s274, 128
        $region48: #{tpu_custom_call.1} parent=43 // pred_fallthru
          _
      $region44: #{tpu_custom_call.1} parent=5 // pred_fallthru
        _
    $region6: #{tpu_custom_call.1} parent=1 // loop_footer
      %s19 = sadd.s32 1, %s15
    $region7: #{tpu_custom_call.1} parent=1 // loop_footer_branch
      %14 = sbr.rel target = $region3
    $region8: #{tpu_custom_call.1} parent=1 // loop_exit
      _
    %280 = vsyncpa [#allocation3], 1
    %s281 = scalar_lea.sflag [#allocation3], 1
    %282 = vsyncpa %s281, 1
    %283 = vsyncpa [#allocation4], 1
    %s284 = scalar_lea.sflag [#allocation4], 1
    %285 = vsyncpa %s284, 1

</llo_original>
